<compile_context>
chip_gen: v7x
topology: tpu7x:2x2x1
jax: 0.10.0
libtpu: 0.0.40
codegen_flags: <defaults>
</compile_context>

<pallas_src>
import jax
import jax.numpy as jnp
from jax.experimental import pallas as pl
from jax.experimental.pallas import tpu as pltpu


def _round_up(v, m):
    return ((v + m - 1) // m) * m


def _vmem_capacity_bytes():
    """Physical VMEM of the local TPU; conservative 64 MiB fallback (v7x-safe)."""
    try:
        return int(pltpu.get_tpu_info().vmem_capacity_bytes)
    except Exception:
        return 64 << 20


# ---------------------------------------------------------------------------
# Kernels
# ---------------------------------------------------------------------------
def ffn_resident_kernel(x_ref, w1_ref, b1_ref, w2_ref, b2_ref, o_ref):
    """Weights fully resident in VMEM: both matmuls in one grid step."""
    h = jnp.dot(x_ref[...], w1_ref[...], preferred_element_type=jnp.float32)
    h = jnp.maximum(h + b1_ref[...], 0.0)                       # bias + ReLU (VPU)
    o = jnp.dot(h.astype(w2_ref.dtype), w2_ref[...],
                preferred_element_type=jnp.float32)
    o_ref[...] = (o + b2_ref[...]).astype(o_ref.dtype)


def ffn_streamed_kernel(x_ref, w1_ref, b1_ref, w2_ref, b2_ref, o_ref, acc_ref):
    """One (tile_m, tile_ff) slice of the hidden-dim reduction."""
    k = pl.program_id(1)

    @pl.when(k == 0)
    def _init():
        acc_ref[...] = jnp.zeros_like(acc_ref)

    h = jnp.dot(x_ref[...], w1_ref[...], preferred_element_type=jnp.float32)
    h = jnp.maximum(h + b1_ref[...], 0.0)
    acc_ref[...] += jnp.dot(h.astype(w2_ref.dtype), w2_ref[...],
                            preferred_element_type=jnp.float32)

    @pl.when(k == pl.num_programs(1) - 1)
    def _finalize():
        # b2 add + down-cast once per output tile, not per reduction step.
        o_ref[...] = (acc_ref[...] + b2_ref[...]).astype(o_ref.dtype)


# ---------------------------------------------------------------------------
# Wrapper
# ---------------------------------------------------------------------------
def position_wise_ffn(x, w1, b1, w2, b2, *, tile_m=None, tile_ff=None,
                      force_streamed=False):
    """x: (..., dim_in); w1: (dim_in, dim_ff); b1: (dim_ff,);
       w2: (dim_ff, dim_in); b2: (dim_in,).  Weights stored pre-transposed."""
    orig_shape = x.shape
    DI = orig_shape[-1]
    FF = w1.shape[1]
    x2d = x.reshape(-1, DI)
    M = x2d.shape[0]

    itemsize = jnp.dtype(x.dtype).itemsize
    w_itemsize = jnp.dtype(w1.dtype).itemsize
    b_itemsize = jnp.dtype(b1.dtype).itemsize
    sub = 16 if itemsize == 2 else 8               # sublane granularity per dtype

    # --- generation-aware VMEM budget: 128 MiB (v5e/v6e) vs 64 MiB per-TC (v7x)
    cap = _vmem_capacity_bytes()
    usable = max(min(cap - (8 << 20), int(cap * 0.875)), 16 << 20)  # compiler headroom
    budget = int(usable * 0.85)                    # budget for tile sizing

    # --- feature-dim padding: 256-aligned to fill the 256x256 MXU on v6e/v7x
    DI_pad = _round_up(DI, 256)
    FF_pad_min = _round_up(FF, 256)

    # TODO(synk): in a real model, pre-pad W1/b1/W2/b2 once at init, not per call.
    def pad2(a, r, c):
        return a if a.shape == (r, c) else jnp.pad(
            a, ((0, r - a.shape[0]), (0, c - a.shape[1])))

    def pad1(a, n):
        return a if a.shape[0] == n else jnp.pad(a, (0, n - a.shape[0]))

    def default_tile_m(pref):
        # at least 2 M-tiles when possible so both v7x TensorCores get work
        half = _round_up(max((M + 1) // 2, 1), sub)
        return max(min(pref, half), sub)

    weight_bytes = (2 * DI_pad * FF_pad_min) * w_itemsize \
        + (FF_pad_min + DI_pad) * b_itemsize

    use_resident = (not force_streamed) and (weight_bytes <= budget // 2)

    # =======================================================================
    # Fast path: weights fully resident (fetched once thanks to constant maps)
    # =======================================================================
    if use_resident:
        FF_pad = FF_pad_min
        tm = tile_m if tile_m is not None else \
            default_tile_m(2048 if itemsize <= 2 else 1024)
        tm = max(_round_up(min(tm, _round_up(M, sub)), sub), sub)

        def resident_fp(tm_):
            io_b = 2 * tm_ * DI_pad * itemsize                  # x + out tile
            h_b = tm_ * FF_pad * 4                              # f32 intermediate
            h_cast_b = tm_ * FF_pad * w_itemsize if w_itemsize < 4 else 0
            o_f32_b = tm_ * DI_pad * 4                          # pre-cast output
            return 2 * io_b + weight_bytes + h_b + h_cast_b + o_f32_b

        while resident_fp(tm) > budget and tm > sub:
            tm = max(_round_up(tm // 2, sub), sub)

        if resident_fp(tm) <= budget:
            tile_m_r = tm
            M_pad = _round_up(M, tile_m_r)
            grid_m = M_pad // tile_m_r

            x2d_p = x2d if x2d.shape == (M_pad, DI_pad) else jnp.pad(
                x2d, ((0, M_pad - M), (0, DI_pad - DI)))
            w1p = pad2(w1, DI_pad, FF_pad)
            b1p = pad1(b1, FF_pad).reshape(1, FF_pad)
            w2p = pad2(w2, FF_pad, DI_pad)
            b2p = pad1(b2, DI_pad).reshape(1, DI_pad)

            need = resident_fp(tile_m_r)
            vmem_limit = min(max(int(need * 1.2) + (2 << 20), 16 << 20), usable)

            out2d = pl.pallas_call(
                ffn_resident_kernel,
                out_shape=jax.ShapeDtypeStruct((M_pad, DI_pad), x.dtype),
                grid_spec=pltpu.PrefetchScalarGridSpec(
                    num_scalar_prefetch=0,
                    grid=(grid_m,),
                    in_specs=[
                        pl.BlockSpec((tile_m_r, DI_pad), lambda i: (i, 0)),
                        # constant block index => weights/biases DMA'd exactly once
                        pl.BlockSpec((DI_pad, FF_pad), lambda i: (0, 0)),
                        pl.BlockSpec((1, FF_pad), lambda i: (0, 0)),
                        pl.BlockSpec((FF_pad, DI_pad), lambda i: (0, 0)),
                        pl.BlockSpec((1, DI_pad), lambda i: (0, 0)),
                    ],
                    out_specs=pl.BlockSpec((tile_m_r, DI_pad), lambda i: (i, 0)),
                ),
                compiler_params=pltpu.CompilerParams(
                    dimension_semantics=("parallel",),
                    vmem_limit_bytes=vmem_limit,
                ),
            )(x2d_p, w1p, b1p, w2p, b2p)
            return out2d[:M, :DI].reshape(orig_shape)
        # else: fall through to the streamed path

    # =======================================================================
    # Streamed path: 2-D grid, ff reduction axis last, resident f32 accumulator
    # =======================================================================
    tm = tile_m if tile_m is not None else \
        default_tile_m(2048 if itemsize <= 2 else 1024)
    tm = max(_round_up(min(tm, _round_up(M, sub)), sub), sub)

    tff = tile_ff if tile_ff is not None else min(1024, FF_pad_min)
    tff = min(max(_round_up(tff, 256), 256), FF_pad_min)

    def streamed_fp(tm_, tff_):
        io_b = 2 * tm_ * DI_pad * itemsize                      # x + out tile
        w_b = 2 * DI_pad * tff_ * w_itemsize                    # w1 + w2 slab
        bias_b = tff_ * b_itemsize + DI_pad * b_itemsize
        acc_b = tm_ * DI_pad * 4                                # scratch accumulator
        h_b = tm_ * tff_ * 4 + (tm_ * tff_ * w_itemsize if w_itemsize < 4 else 0)
        # x/out/w1/w2/b1 double-buffered by the pipeline; b2 fetched once; + acc + h
        return 2 * (io_b + w_b + bias_b) + acc_b + h_b

    # Shrink tile_ff first (keeps tile_m / arithmetic intensity high), then tile_m.
    while streamed_fp(tm, tff) > budget:
        if tff > 256:
            tff //= 2
        elif tm > sub:
            tm = max(_round_up(tm // 2, sub), sub)
        else:
            break

    tile_m_s, tile_ff_s = tm, tff
    FF_pad = _round_up(FF, tile_ff_s)
    M_pad = _round_up(M, tile_m_s)
    grid_m = M_pad // tile_m_s
    grid_k = FF_pad // tile_ff_s

    def serp(i, k):
        # zig-zag the reduction index so the weight block index is unchanged
        # across the i -> i+1 grid boundary (Pallas skips the re-fetch there).
        return k + (i % 2) * (grid_k - 1 - 2 * k)

    x2d_p = x2d if x2d.shape == (M_pad, DI_pad) else jnp.pad(
        x2d, ((0, M_pad - M), (0, DI_pad - DI)))
    w1p = pad2(w1, DI_pad, FF_pad)
    b1p = pad1(b1, FF_pad).reshape(1, FF_pad)
    w2p = pad2(w2, FF_pad, DI_pad)
    b2p = pad1(b2, DI_pad).reshape(1, DI_pad)

    need = streamed_fp(tile_m_s, tile_ff_s)
    vmem_limit = min(max(int(need * 1.2) + (2 << 20), 16 << 20), usable)

    out2d = pl.pallas_call(
        ffn_streamed_kernel,
        out_shape=jax.ShapeDtypeStruct((M_pad, DI_pad), x.dtype),
        grid_spec=pltpu.PrefetchScalarGridSpec(
            num_scalar_prefetch=0,
            grid=(grid_m, grid_k),
            in_specs=[
                # activations: pipelined / double-buffered along M
                pl.BlockSpec((tile_m_s, DI_pad), lambda i, k: (i, 0)),
                # weights & b1: ff-sliced, DEFAULT double-buffering so the DMA
                # is prefetched under the previous step's MXU work; serpentine k.
                pl.BlockSpec((DI_pad, tile_ff_s), lambda i, k: (0, serp(i, k))),
                pl.BlockSpec((1, tile_ff_s), lambda i, k: (0, serp(i, k))),
                pl.BlockSpec((tile_ff_s, DI_pad), lambda i, k: (serp(i, k), 0)),
                # b2: constant index -> fetched once
                pl.BlockSpec((1, DI_pad), lambda i, k: (0, 0)),
            ],
            # output block constant across the reduction axis -> accumulator
            out_specs=pl.BlockSpec((tile_m_s, DI_pad), lambda i, k: (i, 0)),
            scratch_shapes=[pltpu.VMEM((tile_m_s, DI_pad), jnp.float32)],
        ),
        compiler_params=pltpu.CompilerParams(
            dimension_semantics=("parallel", "arbitrary"),
            vmem_limit_bytes=vmem_limit,
        ),
    )(x2d_p, w1p, b1p, w2p, b2p)

    return out2d[:M, :DI].reshape(orig_shape)
    # TODO(synk): optional bf16 cast of f32 inputs/weights (keep f32 accumulation)
    # would ~3x MXU throughput on v6e/v7x if the model tolerates it.


def init_params(key, dim_in, dim_ff, dtype=jnp.float32):
    # Deterministic init mimicking torch.nn.Linear (uniform +/- 1/sqrt(fan_in)).
    k1, k2, k3, k4 = jax.random.split(key, 4)
    bound1 = 1.0 / (dim_in ** 0.5)
    bound2 = 1.0 / (dim_ff ** 0.5)
    # stored already transposed: (in, out)
    w1 = jax.random.uniform(k1, (dim_in, dim_ff), dtype, -bound1, bound1)
    b1 = jax.random.uniform(k2, (dim_ff,), dtype, -bound1, bound1)
    w2 = jax.random.uniform(k3, (dim_ff, dim_in), dtype, -bound2, bound2)
    b2 = jax.random.uniform(k4, (dim_in,), dtype, -bound2, bound2)
    return w1, b1, w2, b2


if __name__ == "__main__":
    batch, seq, dim_in, dim_ff = 2, 8, 32, 64
    key = jax.random.PRNGKey(0)
    kx, kp = jax.random.split(key)

    x = jax.random.normal(kx, (batch, seq, dim_in), jnp.float32)
    w1, b1, w2, b2 = init_params(kp, dim_in, dim_ff)

    ref = jnp.maximum(x @ w1 + b1, 0.0) @ w2 + b2

    # Resident fast path (weights fit in VMEM at these shapes).
    out = jax.block_until_ready(position_wise_ffn(x, w1, b1, w2, b2))
    assert out.shape == x.shape
    assert jnp.allclose(out, ref, atol=1e-4, rtol=1e-4)

    # Streamed (reduction) path, exercised explicitly.
    out_s = jax.block_until_ready(
        position_wise_ffn(x, w1, b1, w2, b2, force_streamed=True))
    assert out_s.shape == x.shape
    assert jnp.allclose(out_s, ref, atol=1e-4, rtol=1e-4)

    print("KERNEL_OK")
</pallas_src>

<mosaic_0001>
module attributes {stable_mosaic.version = 11 : i64} {
  func.func @ffn_resident_kernel(%arg0: i32, %arg1: memref<8x256xf32, #tpu.memory_space<vmem>>, %arg2: memref<256x256xf32, #tpu.memory_space<vmem>>, %arg3: memref<1x256xf32, #tpu.memory_space<vmem>>, %arg4: memref<256x256xf32, #tpu.memory_space<vmem>>, %arg5: memref<1x256xf32, #tpu.memory_space<vmem>>, %arg6: memref<8x256xf32, #tpu.memory_space<vmem>>) attributes {dimension_semantics = [#tpu.dimension_semantics<parallel>], iteration_bounds = array<i64: 2>, scalar_prefetch = 0 : i64, scratch_operands = 0 : i64, tpu.core_type = #tpu.core_type<tc>, window_params = [{transform_indices = @transform_0, window_bounds = array<i64: 8, 256>}, {pipeline_mode = #tpu.pipeline_mode<synchronous>, transform_indices = @transform_1, window_bounds = array<i64: 256, 256>}, {pipeline_mode = #tpu.pipeline_mode<synchronous>, transform_indices = @transform_2, window_bounds = array<i64: 1, 256>}, {pipeline_mode = #tpu.pipeline_mode<synchronous>, transform_indices = @transform_3, window_bounds = array<i64: 256, 256>}, {pipeline_mode = #tpu.pipeline_mode<synchronous>, transform_indices = @transform_4, window_bounds = array<i64: 1, 256>}, {transform_indices = @transform_5, window_bounds = array<i64: 8, 256>}]} {
    %c0 = arith.constant 0 : index
    %c0_0 = arith.constant 0 : index
    %0 = vector.load %arg1[%c0, %c0_0] : memref<8x256xf32, #tpu.memory_space<vmem>>, vector<8x256xf32>
    %c0_1 = arith.constant 0 : index
    %c0_2 = arith.constant 0 : index
    %1 = vector.load %arg2[%c0_1, %c0_2] : memref<256x256xf32, #tpu.memory_space<vmem>>, vector<256x256xf32>
    %cst = arith.constant dense<0.000000e+00> : vector<8x256xf32>
    %2 = tpu.matmul %0, %1, %cst {dimension_numbers = #tpu.dot_dimension_numbers<[1], [0], [0], [1], [0, 0, 1, 1], [], []>} : vector<8x256xf32>, vector<256x256xf32>, vector<8x256xf32> -> vector<8x256xf32>
    %c0_3 = arith.constant 0 : index
    %c0_4 = arith.constant 0 : index
    %3 = vector.load %arg3[%c0_3, %c0_4] : memref<1x256xf32, #tpu.memory_space<vmem>>, vector<1x256xf32>
    %4 = vector.broadcast %3 : vector<1x256xf32> to vector<8x256xf32>
    %5 = arith.addf %2, %4 : vector<8x256xf32>
    %cst_5 = arith.constant 0.000000e+00 : f32
    %6 = vector.broadcast %cst_5 : f32 to vector<8x256xf32>
    %7 = arith.maximumf %5, %6 : vector<8x256xf32>
    %c0_6 = arith.constant 0 : index
    %c0_7 = arith.constant 0 : index
    %8 = vector.load %arg4[%c0_6, %c0_7] : memref<256x256xf32, #tpu.memory_space<vmem>>, vector<256x256xf32>
    %cst_8 = arith.constant dense<0.000000e+00> : vector<8x256xf32>
    %9 = tpu.matmul %7, %8, %cst_8 {dimension_numbers = #tpu.dot_dimension_numbers<[1], [0], [0], [1], [0, 0, 1, 1], [], []>} : vector<8x256xf32>, vector<256x256xf32>, vector<8x256xf32> -> vector<8x256xf32>
    %c0_9 = arith.constant 0 : index
    %c0_10 = arith.constant 0 : index
    %10 = vector.load %arg5[%c0_9, %c0_10] : memref<1x256xf32, #tpu.memory_space<vmem>>, vector<1x256xf32>
    %11 = vector.broadcast %10 : vector<1x256xf32> to vector<8x256xf32>
    %12 = arith.addf %9, %11 : vector<8x256xf32>
    %c0_11 = arith.constant 0 : index
    %c0_12 = arith.constant 0 : index
    %13 = vector.load %arg6[%c0_11, %c0_12] : memref<8x256xf32, #tpu.memory_space<vmem>>, vector<8x256xf32>
    tpu.vector_store %arg6[%c0_11, %c0_12], %12 {strides = array<i32>} : memref<8x256xf32, #tpu.memory_space<vmem>>, vector<8x256xf32>,
    return
  }
  func.func @transform_0(%arg0: i32) -> (i32, i32) {
    %c0_i32 = arith.constant 0 : i32
    %c0_i32_0 = arith.constant 0 : i32
    return %arg0, %c0_i32 : i32, i32
  }
  func.func @transform_1(%arg0: i32) -> (i32, i32) {
    %c0_i32 = arith.constant 0 : i32
    %c0_i32_0 = arith.constant 0 : i32
    %c0_i32_1 = arith.constant 0 : i32
    return %c0_i32, %c0_i32_0 : i32, i32
  }
  func.func @transform_2(%arg0: i32) -> (i32, i32) {
    %c0_i32 = arith.constant 0 : i32
    %c0_i32_0 = arith.constant 0 : i32
    %c0_i32_1 = arith.constant 0 : i32
    return %c0_i32, %c0_i32_0 : i32, i32
  }
  func.func @transform_3(%arg0: i32) -> (i32, i32) {
    %c0_i32 = arith.constant 0 : i32
    %c0_i32_0 = arith.constant 0 : i32
    %c0_i32_1 = arith.constant 0 : i32
    return %c0_i32, %c0_i32_0 : i32, i32
  }
  func.func @transform_4(%arg0: i32) -> (i32, i32) {
    %c0_i32 = arith.constant 0 : i32
    %c0_i32_0 = arith.constant 0 : i32
    %c0_i32_1 = arith.constant 0 : i32
    return %c0_i32, %c0_i32_0 : i32, i32
  }
  func.func @transform_5(%arg0: i32) -> (i32, i32) {
    %c0_i32 = arith.constant 0 : i32
    %c0_i32_0 = arith.constant 0 : i32
    return %arg0, %c0_i32 : i32, i32
  }
}

</mosaic_0001>

<llo_original>
// kernel: tpu_custom_call.1
$region0: #{tpu_custom_call.1}
  #allocation0 [shape = 'u32[]', space=smem, size = 0x4, offset = 0x4, fixed_abs, tag = 'smem constant byte address 0x4 - core index']
  #allocation1 [shape = 'u32[144,128]{1,0:T(1,128)}', space=vmem, size = 0x12000, scoped, tag = 'internal scratch']
  %s0 = inlined_call_operand.hbm [shape: f32[16,256], index: 0, kind: input, shape index: {}]
  %s1 = inlined_call_operand.hbm [shape: f32[256,256], index: 1, kind: input, shape index: {}]
  %s2 = inlined_call_operand.vmem [shape: f32[1,256], index: 2, kind: input, shape index: {}]
  %s3 = inlined_call_operand.hbm [shape: f32[256,256], index: 3, kind: input, shape index: {}]
  %s4 = inlined_call_operand.vmem [shape: f32[1,256], index: 4, kind: input, shape index: {}]
  %s5 = inlined_call_operand.hbm [shape: f32[16,256], index: 5, kind: output, shape index: {}]
  %s6 = sld [smem:[#allocation0]]
  $region65: #{tpu_custom_call.1} parent=0
    _
  %s8 = ssub.s32 1, %s6
  %s9 = scalar_select 0, %s8, %s6
  $region1: #{tpu_custom_call.1} parent=0
    #allocation2 [shape = 'u8[16384]{0}', space=vmem, size = 0x4000, scoped, tag = 'input window, operand 0']
    #allocation3 [shape = 's32[2]{0}', space=sflag, size = 0x8, scoped, tag = 'scoped memory for tpu_custom_call.1']
    #allocation4 [shape = 's32[2]{0}', space=sflag, size = 0x8, scoped, tag = 'scoped memory for tpu_custom_call.1']
    #allocation5 [shape = 'u8[262144]{0}', space=vmem, size = 0x40000, scoped, tag = 'input window, operand 1, single buffered']
    #allocation6 [shape = 's32[1]{0}', space=sflag, size = 0x4, scoped, tag = 'scoped memory for tpu_custom_call.1']
    #allocation7 [shape = 'u8[262144]{0}', space=vmem, size = 0x40000, scoped, tag = 'input window, operand 3, single buffered']
    #allocation8 [shape = 'u8[16384]{0}', space=vmem, size = 0x4000, scoped, tag = 'output window, operand 0']
    %10 = vsyncpa [#allocation3], 0
    %s11 = scalar_lea.sflag [#allocation3], 1
    %12 = vsyncpa %s11, 0
    %13 = vsyncpa [#allocation6], 0
    %14 = vsyncpa [#allocation4], 0
    %s15 = scalar_lea.sflag [#allocation4], 1
    %16 = vsyncpa %s15, 0
    loop: start=0, step=1, limit=4
    $region2: #{tpu_custom_call.1} parent=1 // loop_pre_header
      _
    $region3: #{tpu_custom_call.1} parent=1 // loop_header
      %s18 = sphi 0, %s22
      %p19 = scmp.ge.s32.totalorder %s18, 4
      %s28 = sphi 0, %s30
      %s31 = sphi 0, %s28
      %s32 = sphi 0, %s31
      %s48 = sphi 0, %s32
      %s52 = sphi 0, %s52
      %s54 = sphi 0, %s52
      %s55 = sphi 0, %s54
      %s69 = sphi 0, %s55
      %s73 = sphi 0, %s73
      %s75 = sphi 0, %s73
      %s76 = sphi 0, %s75
      %s90 = sphi 0, %s76
      %s94 = sphi 0, %s94
      %s96 = sphi 0, %s94
      %s97 = sphi 0, %s96
      %s111 = sphi 0, %s97
      %s115 = sphi 0, %s115
      %s117 = sphi 0, %s115
      %s118 = sphi 0, %s117
      %s132 = sphi 0, %s118
      %s138 = sphi 0, %s140
      %s141 = sphi 0, %s138
      %s142 = sphi 0, %s141
      %s158 = sphi 0, %s142
    $region4: #{tpu_custom_call.1} parent=1 // loop_header_branch
      %21 = sbr.rel (%p19) target = $region8
    $region5: #{tpu_custom_call.1} parent=1 // loop_body
      %s23 = ssub.s32 %s18, 1
      %s24 = ssub.s32 %s18, 2
      %s25 = sadd.s32 %s18, 1
      %s26 = ssub.s32 %s18, %s25
      %p27 = scmp.eq.s32.totalorder %s26, 0
      %s29 = sadd.s32 %s28, 1
      %s30 = scalar_select %p27, %s28, %s29
      %p33 = pneg %p27
      %p34 = scmp.eq.s32.totalorder %s18, 1
      %p35 = por %p33, %p34
      %p36 = scmp.ne.s32.totalorder %s28, %s31
      %p37 = scmp.eq.s32.totalorder %s18, 0
      %p38 = por %p36, %p37
      %p39 = scmp.ne.s32.totalorder %s28, %s31
      %p40 = scmp.eq.s32.totalorder %s23, 1
      %p41 = por %p39, %p40
      %p42 = scmp.ne.s32.totalorder %s31, %s32
      %p43 = scmp.eq.s32.totalorder %s23, 0
      %p44 = por %p42, %p43
      %p45 = scmp.ne.s32.totalorder %s31, %s32
      %p46 = scmp.eq.s32.totalorder %s24, 1
      %p47 = por %p45, %p46
      %p49 = scmp.ne.s32.totalorder %s32, %s48
      %p50 = scmp.eq.s32.totalorder %s24, 0
      %p51 = por %p49, %p50
      %s53 = sadd.s32 %s52, 1
      %p56 = scmp.eq.s32.totalorder %s18, 1
      %p57 = scmp.ne.s32.totalorder %s52, %s54
      %p58 = scmp.eq.s32.totalorder %s18, 0
      %p59 = por %p57, %p58
      %p60 = scmp.ne.s32.totalorder %s52, %s54
      %p61 = scmp.eq.s32.totalorder %s23, 1
      %p62 = por %p60, %p61
      %p63 = scmp.ne.s32.totalorder %s54, %s55
      %p64 = scmp.eq.s32.totalorder %s23, 0
      %p65 = por %p63, %p64
      %p66 = scmp.ne.s32.totalorder %s54, %s55
      %p67 = scmp.eq.s32.totalorder %s24, 1
      %p68 = por %p66, %p67
      %p70 = scmp.ne.s32.totalorder %s55, %s69
      %p71 = scmp.eq.s32.totalorder %s24, 0
      %p72 = por %p70, %p71
      %s74 = sadd.s32 %s73, 1
      %p77 = scmp.eq.s32.totalorder %s18, 1
      %p78 = scmp.ne.s32.totalorder %s73, %s75
      %p79 = scmp.eq.s32.totalorder %s18, 0
      %p80 = por %p78, %p79
      %p81 = scmp.ne.s32.totalorder %s73, %s75
      %p82 = scmp.eq.s32.totalorder %s23, 1
      %p83 = por %p81, %p82
      %p84 = scmp.ne.s32.totalorder %s75, %s76
      %p85 = scmp.eq.s32.totalorder %s23, 0
      %p86 = por %p84, %p85
      %p87 = scmp.ne.s32.totalorder %s75, %s76
      %p88 = scmp.eq.s32.totalorder %s24, 1
      %p89 = por %p87, %p88
      %p91 = scmp.ne.s32.totalorder %s76, %s90
      %p92 = scmp.eq.s32.totalorder %s24, 0
      %p93 = por %p91, %p92
      %s95 = sadd.s32 %s94, 1
      %p98 = scmp.eq.s32.totalorder %s18, 1
      %p99 = scmp.ne.s32.totalorder %s94, %s96
      %p100 = scmp.eq.s32.totalorder %s18, 0
      %p101 = por %p99, %p100
      %p102 = scmp.ne.s32.totalorder %s94, %s96
      %p103 = scmp.eq.s32.totalorder %s23, 1
      %p104 = por %p102, %p103
      %p105 = scmp.ne.s32.totalorder %s96, %s97
      %p106 = scmp.eq.s32.totalorder %s23, 0
      %p107 = por %p105, %p106
      %p108 = scmp.ne.s32.totalorder %s96, %s97
      %p109 = scmp.eq.s32.totalorder %s24, 1
      %p110 = por %p108, %p109
      %p112 = scmp.ne.s32.totalorder %s97, %s111
      %p113 = scmp.eq.s32.totalorder %s24, 0
      %p114 = por %p112, %p113
      %s116 = sadd.s32 %s115, 1
      %p119 = scmp.eq.s32.totalorder %s18, 1
      %p120 = scmp.ne.s32.totalorder %s115, %s117
      %p121 = scmp.eq.s32.totalorder %s18, 0
      %p122 = por %p120, %p121
      %p123 = scmp.ne.s32.totalorder %s115, %s117
      %p124 = scmp.eq.s32.totalorder %s23, 1
      %p125 = por %p123, %p124
      %p126 = scmp.ne.s32.totalorder %s117, %s118
      %p127 = scmp.eq.s32.totalorder %s23, 0
      %p128 = por %p126, %p127
      %p129 = scmp.ne.s32.totalorder %s117, %s118
      %p130 = scmp.eq.s32.totalorder %s24, 1
      %p131 = por %p129, %p130
      %p133 = scmp.ne.s32.totalorder %s118, %s132
      %p134 = scmp.eq.s32.totalorder %s24, 0
      %p135 = por %p133, %p134
      %s136 = ssub.s32 %s18, %s25
      %p137 = scmp.eq.s32.totalorder %s136, 0
      %s139 = sadd.s32 %s138, 1
      %s140 = scalar_select %p137, %s138, %s139
      %p143 = pneg %p137
      %p144 = scmp.eq.s32.totalorder %s18, 1
      %p145 = por %p143, %p144
      %p146 = scmp.ne.s32.totalorder %s138, %s141
      %p147 = scmp.eq.s32.totalorder %s18, 0
      %p148 = por %p146, %p147
      %p149 = scmp.ne.s32.totalorder %s138, %s141
      %p150 = scmp.eq.s32.totalorder %s23, 1
      %p151 = por %p149, %p150
      %p152 = scmp.ne.s32.totalorder %s141, %s142
      %p153 = scmp.eq.s32.totalorder %s23, 0
      %p154 = por %p152, %p153
      %p155 = scmp.ne.s32.totalorder %s141, %s142
      %p156 = scmp.eq.s32.totalorder %s24, 1
      %p157 = por %p155, %p156
      %p159 = scmp.ne.s32.totalorder %s142, %s158
      %p160 = scmp.eq.s32.totalorder %s24, 0
      %p161 = por %p159, %p160
      %p162 = scmp.le.s32.totalorder 1, %s18
      %p163 = scmp.lt.s32.totalorder %s18, 3
      %p164 = pnand %p162, %p163
      %p165 = pneg %p164
      // Predicated region
      $region9: #{tpu_custom_call.1} parent=5 // pred_check
        _
      $region10: #{tpu_custom_call.1} parent=5 // pred_check_branch
        %167 = sbr.rel (%p164) target = $region12
      $region11: #{tpu_custom_call.1} parent=5 // pred_region
        %s168 = ssub.s32 %s18, 1
        // Predicated region
        $region13: #{tpu_custom_call.1} parent=11 // pred_check
          %p169 = pneg %p65
        $region14: #{tpu_custom_call.1} parent=11 // pred_check_branch
          %171 = sbr.rel (%p169) target = $region16
        $region15: #{tpu_custom_call.1} parent=11 // pred_region
          %s173 = ssub.s32 8192, 8192
          %174 = vsyncadd [#allocation6], %s173
          %s175 = sshll.u32 [#allocation5], 4
          %s176 = int_to_ptr.vmem [resolvable:$true] %s175
          %181 = dma.hbm_to_vmem [thread:$0]  %s1, 8192, %s176, [#allocation6], 256, 256, 16
        $region16: #{tpu_custom_call.1} parent=11 // pred_fallthru
          _
        // Predicated region
        $region17: #{tpu_custom_call.1} parent=11 // pred_check
          %p182 = pneg %p86
        $region18: #{tpu_custom_call.1} parent=11 // pred_check_branch
          %184 = sbr.rel (%p182) target = $region20
        $region19: #{tpu_custom_call.1} parent=11 // pred_region
          _
        $region20: #{tpu_custom_call.1} parent=11 // pred_fallthru
          _
        // Predicated region
        $region21: #{tpu_custom_call.1} parent=11 // pred_check
          %p185 = pneg %p107
        $region22: #{tpu_custom_call.1} parent=11 // pred_check_branch
          %187 = sbr.rel (%p185) target = $region24
        $region23: #{tpu_custom_call.1} parent=11 // pred_region
          %s189 = ssub.s32 8192, 8192
          %190 = vsyncadd [#allocation6], %s189
          %s191 = sshll.u32 [#allocation7], 4
          %s192 = int_to_ptr.vmem [resolvable:$true] %s191
          %197 = dma.hbm_to_vmem [thread:$0]  %s3, 8192, %s192, [#allocation6], 256, 256, 16
        $region24: #{tpu_custom_call.1} parent=11 // pred_fallthru
          _
        // Predicated region
        $region25: #{tpu_custom_call.1} parent=11 // pred_check
          %p198 = pneg %p128
        $region26: #{tpu_custom_call.1} parent=11 // pred_check_branch
          %200 = sbr.rel (%p198) target = $region28
        $region27: #{tpu_custom_call.1} parent=11 // pred_region
          _
        $region28: #{tpu_custom_call.1} parent=11 // pred_fallthru
          _
      $region12: #{tpu_custom_call.1} parent=5 // pred_fallthru
        _
      %p201 = scmp.lt.s32.totalorder %s18, 2
      // Predicated region
      $region29: #{tpu_custom_call.1} parent=5 // pred_check
        %p202 = pneg %p201
      $region30: #{tpu_custom_call.1} parent=5 // pred_check_branch
        %204 = sbr.rel (%p202) target = $region32
      $region31: #{tpu_custom_call.1} parent=5 // pred_region
        // Predicated region
        $region33: #{tpu_custom_call.1} parent=31 // pred_check
          %p205 = pneg %p38
        $region34: #{tpu_custom_call.1} parent=31 // pred_check_branch
          %207 = sbr.rel (%p205) target = $region36
        $region35: #{tpu_custom_call.1} parent=31 // pred_region
          %s208 = sand.u32 %s28, 1
          %s209 = scalar_lea.sflag [#allocation3], %s208
          %s210 = sand.u32 %s28, 1
          %s211 = smul.addr %s210, 16
          %s212 = scalar_lea.vmem [#allocation2], %s211
          %s214 = ssub.s32 256, 256
          %215 = vsyncadd %s209, %s214
          %s216 = smul.addr %s18, 2
          %s217 = smul.addr %s216, 128
          %s218 = scalar_lea.hbm %s0, %s217
          %s220 = sshll.u32 %s212, 4
          %s221 = int_to_ptr.vmem [resolvable:$true] %s220
          %223 = dma.hbm_to_vmem [thread:$0]  %s218, 256, %s221, %s209
        $region36: #{tpu_custom_call.1} parent=31 // pred_fallthru
          _
      $region32: #{tpu_custom_call.1} parent=5 // pred_fallthru
        _
      %p224 = scmp.le.s32.totalorder 1, %s18
      %p225 = scmp.lt.s32.totalorder %s18, 3
      %p226 = pnand %p224, %p225
      %p227 = pneg %p226
      // Predicated region
      $region37: #{tpu_custom_call.1} parent=5 // pred_check
        _
      $region38: #{tpu_custom_call.1} parent=5 // pred_check_branch
        %229 = sbr.rel (%p226) target = $region40
      $region39: #{tpu_custom_call.1} parent=5 // pred_region
        %s230 = ssub.s32 %s18, 1
        %s231 = sand.u32 %s31, 1
        %s232 = scalar_lea.sflag [#allocation3], %s231
        %s233 = sand.u32 %s31, 1
        %s234 = smul.addr %s233, 16
        %s235 = scalar_lea.vmem [#allocation2], %s234
        // Predicated region
        $region41: #{tpu_custom_call.1} parent=39 // pred_check
          %p236 = pneg %p44
        $region42: #{tpu_custom_call.1} parent=39 // pred_check_branch
          %238 = sbr.rel (%p236) target = $region44
        $region43: #{tpu_custom_call.1} parent=39 // pred_region
          %239 = dma.done %s232, 256
        $region44: #{tpu_custom_call.1} parent=39 // pred_fallthru
          _
        // Predicated region
        $region45: #{tpu_custom_call.1} parent=39 // pred_check
          %p240 = pneg %p65
        $region46: #{tpu_custom_call.1} parent=39 // pred_check_branch
          %242 = sbr.rel (%p240) target = $region48
        $region47: #{tpu_custom_call.1} parent=39 // pred_region
          %243 = dma.done [#allocation6], 8192
        $region48: #{tpu_custom_call.1} parent=39 // pred_fallthru
          _
        // Predicated region
        $region49: #{tpu_custom_call.1} parent=39 // pred_check
          %p244 = pneg %p107
        $region50: #{tpu_custom_call.1} parent=39 // pred_check_branch
          %246 = sbr.rel (%p244) target = $region52
        $region51: #{tpu_custom_call.1} parent=39 // pred_region
          %247 = dma.done [#allocation6], 8192
        $region52: #{tpu_custom_call.1} parent=39 // pred_fallthru
          _
        %s248 = sand.u32 %s31, 1
        %s249 = scalar_lea.sflag [#allocation3], %s248
        %s250 = sand.u32 %s31, 1
        %s251 = smul.addr %s250, 16
        %s252 = scalar_lea.vmem [#allocation2], %s251
        %p253 = pneg %p44
        %p254 = pneg %p41
        %p255 = pneg %p65
        %p256 = pneg %p62
        %p257 = pneg %p86
        %p258 = pneg %p83
        %p259 = pneg %p107
        %p260 = pneg %p104
        %p261 = pneg %p128
        %p262 = pneg %p125
        %p263 = pneg %p154
        %p264 = pneg %p151
        %s265 = sand.u32 %s141, 1
        %s266 = scalar_lea.sflag [#allocation4], %s265
        %s267 = sand.u32 %s141, 1
        %s268 = smul.addr %s267, 16
        %s269 = scalar_lea.vmem [#allocation8], %s268
        %v270 = vld [vmem:[%s235] sm:$0xff]
        %v271 = vld [vmem:[%s235 + $0x8] sm:$0xff]
        %v272 = vld [vmem:[#allocation5] sm:$0xff]
        %v273 = vld [vmem:[#allocation5 + $0x8] sm:$0xff]
        %v274 = vld [vmem:[#allocation5 + $0x10] sm:$0xff]
        %v275 = vld [vmem:[#allocation5 + $0x18] sm:$0xff]
        %v276 = vld [vmem:[#allocation5 + $0x20] sm:$0xff]
        %v277 = vld [vmem:[#allocation5 + $0x28] sm:$0xff]
        %v278 = vld [vmem:[#allocation5 + $0x30] sm:$0xff]
        %v279 = vld [vmem:[#allocation5 + $0x38] sm:$0xff]
        %v280 = vld [vmem:[#allocation5 + $0x40] sm:$0xff]
        %v281 = vld [vmem:[#allocation5 + $0x48] sm:$0xff]
        %v282 = vld [vmem:[#allocation5 + $0x50] sm:$0xff]
        %v283 = vld [vmem:[#allocation5 + $0x58] sm:$0xff]
        %v284 = vld [vmem:[#allocation5 + $0x60] sm:$0xff]
        %v285 = vld [vmem:[#allocation5 + $0x68] sm:$0xff]
        %v286 = vld [vmem:[#allocation5 + $0x70] sm:$0xff]
        %v287 = vld [vmem:[#allocation5 + $0x78] sm:$0xff]
        %v288 = vld [vmem:[#allocation5 + $0x80] sm:$0xff]
        %v289 = vld [vmem:[#allocation5 + $0x88] sm:$0xff]
        %v290 = vld [vmem:[#allocation5 + $0x90] sm:$0xff]
        %v291 = vld [vmem:[#allocation5 + $0x98] sm:$0xff]
        %v292 = vld [vmem:[#allocation5 + $0xa0] sm:$0xff]
        %v293 = vld [vmem:[#allocation5 + $0xa8] sm:$0xff]
        %v294 = vld [vmem:[#allocation5 + $0xb0] sm:$0xff]
        %v295 = vld [vmem:[#allocation5 + $0xb8] sm:$0xff]
        %v296 = vld [vmem:[#allocation5 + $0xc0] sm:$0xff]
        %v297 = vld [vmem:[#allocation5 + $0xc8] sm:$0xff]
        %v298 = vld [vmem:[#allocation5 + $0xd0] sm:$0xff]
        %v299 = vld [vmem:[#allocation5 + $0xd8] sm:$0xff]
        %v300 = vld [vmem:[#allocation5 + $0xe0] sm:$0xff]
        %v301 = vld [vmem:[#allocation5 + $0xe8] sm:$0xff]
        %v302 = vld [vmem:[#allocation5 + $0xf0] sm:$0xff]
        %v303 = vld [vmem:[#allocation5 + $0xf8] sm:$0xff]
        %v304 = vld [vmem:[#allocation5 + $0x100] sm:$0xff]
        %v305 = vld [vmem:[#allocation5 + $0x108] sm:$0xff]
        %v306 = vld [vmem:[#allocation5 + $0x110] sm:$0xff]
        %v307 = vld [vmem:[#allocation5 + $0x118] sm:$0xff]
        %v308 = vld [vmem:[#allocation5 + $0x120] sm:$0xff]
        %v309 = vld [vmem:[#allocation5 + $0x128] sm:$0xff]
        %v310 = vld [vmem:[#allocation5 + $0x130] sm:$0xff]
        %v311 = vld [vmem:[#allocation5 + $0x138] sm:$0xff]
        %v312 = vld [vmem:[#allocation5 + $0x140] sm:$0xff]
        %v313 = vld [vmem:[#allocation5 + $0x148] sm:$0xff]
        %v314 = vld [vmem:[#allocation5 + $0x150] sm:$0xff]
        %v315 = vld [vmem:[#allocation5 + $0x158] sm:$0xff]
        %v316 = vld [vmem:[#allocation5 + $0x160] sm:$0xff]
        %v317 = vld [vmem:[#allocation5 + $0x168] sm:$0xff]
        %v318 = vld [vmem:[#allocation5 + $0x170] sm:$0xff]
        %v319 = vld [vmem:[#allocation5 + $0x178] sm:$0xff]
        %v320 = vld [vmem:[#allocation5 + $0x180] sm:$0xff]
        %v321 = vld [vmem:[#allocation5 + $0x188] sm:$0xff]
        %v322 = vld [vmem:[#allocation5 + $0x190] sm:$0xff]
        %v323 = vld [vmem:[#allocation5 + $0x198] sm:$0xff]
        %v324 = vld [vmem:[#allocation5 + $0x1a0] sm:$0xff]
        %v325 = vld [vmem:[#allocation5 + $0x1a8] sm:$0xff]
        %v326 = vld [vmem:[#allocation5 + $0x1b0] sm:$0xff]
        %v327 = vld [vmem:[#allocation5 + $0x1b8] sm:$0xff]
        %v328 = vld [vmem:[#allocation5 + $0x1c0] sm:$0xff]
        %v329 = vld [vmem:[#allocation5 + $0x1c8] sm:$0xff]
        %v330 = vld [vmem:[#allocation5 + $0x1d0] sm:$0xff]
        %v331 = vld [vmem:[#allocation5 + $0x1d8] sm:$0xff]
        %v332 = vld [vmem:[#allocation5 + $0x1e0] sm:$0xff]
        %v333 = vld [vmem:[#allocation5 + $0x1e8] sm:$0xff]
        %v334 = vld [vmem:[#allocation5 + $0x1f0] sm:$0xff]
        %v335 = vld [vmem:[#allocation5 + $0x1f8] sm:$0xff]
        %v336 = vld [vmem:[%s2] sm:$0x3]
        %v338 = vlaneseq
        %v339 = vshrl.u32 %v338, 7
        %v340 = vsub.s32 0, %v339
        %v341 = vrot.slane %v336, %v340
        %v342 = vlaneseq
        %v343 = vshrl.u32 %v342, 7
        %v344 = vsub.s32 1, %v343
        %v345 = vrot.slane %v336, %v344
        %348 = vmatprep.subr.mxu0 %v273
        %349 = vmatpush1.msra.mxu0 %v272
        %350 = vmatprep.subr.mxu0 %v275
        %351 = vmatpush1.msra.mxu0 %v274
        %352 = vmatprep.subr.mxu0 %v277
        %353 = vmatpush1.msra.mxu0 %v276
        %354 = vmatprep.subr.mxu0 %v279
        %355 = vmatpush1.msra.mxu0 %v278
        %356 = vmatprep.subr.mxu0 %v281
        %357 = vmatpush1.msra.mxu0 %v280
        %358 = vmatprep.subr.mxu0 %v283
        %359 = vmatpush1.msra.mxu0 %v282
        %360 = vmatprep.subr.mxu0 %v285
        %361 = vmatpush1.msra.mxu0 %v284
        %362 = vmatprep.subr.mxu0 %v287
        %363 = vmatpush1.msra.mxu0 %v286
        %364 = vmatprep.subr.mxu0 %v289
        %365 = vmatpush1.msra.mxu0 %v288
        %366 = vmatprep.subr.mxu0 %v291
        %367 = vmatpush1.msra.mxu0 %v290
        %368 = vmatprep.subr.mxu0 %v293
        %369 = vmatpush1.msra.mxu0 %v292
        %370 = vmatprep.subr.mxu0 %v295
        %371 = vmatpush1.msra.mxu0 %v294
        %372 = vmatprep.subr.mxu0 %v297
        %373 = vmatpush1.msra.mxu0 %v296
        %374 = vmatprep.subr.mxu0 %v299
        %375 = vmatpush1.msra.mxu0 %v298
        %376 = vmatprep.subr.mxu0 %v301
        %377 = vmatpush1.msra.mxu0 %v300
        %378 = vmatprep.subr.mxu0 %v303
        %379 = vmatpush1.msra.mxu0 %v302
        %380 = vmatprep.subr.mxu0 %v305
        %381 = vmatpush1.msra.mxu0 %v304
        %382 = vmatprep.subr.mxu0 %v307
        %383 = vmatpush1.msra.mxu0 %v306
        %384 = vmatprep.subr.mxu0 %v309
        %385 = vmatpush1.msra.mxu0 %v308
        %386 = vmatprep.subr.mxu0 %v311
        %387 = vmatpush1.msra.mxu0 %v310
        %388 = vmatprep.subr.mxu0 %v313
        %389 = vmatpush1.msra.mxu0 %v312
        %390 = vmatprep.subr.mxu0 %v315
        %391 = vmatpush1.msra.mxu0 %v314
        %392 = vmatprep.subr.mxu0 %v317
        %393 = vmatpush1.msra.mxu0 %v316
        %394 = vmatprep.subr.mxu0 %v319
        %395 = vmatpush1.msra.mxu0 %v318
        %396 = vmatprep.subr.mxu0 %v321
        %397 = vmatpush1.msra.mxu0 %v320
        %398 = vmatprep.subr.mxu0 %v323
        %399 = vmatpush1.msra.mxu0 %v322
        %400 = vmatprep.subr.mxu0 %v325
        %401 = vmatpush1.msra.mxu0 %v324
        %402 = vmatprep.subr.mxu0 %v327
        %403 = vmatpush1.msra.mxu0 %v326
        %404 = vmatprep.subr.mxu0 %v329
        %405 = vmatpush1.msra.mxu0 %v328
        %406 = vmatprep.subr.mxu0 %v331
        %407 = vmatpush1.msra.mxu0 %v330
        %408 = vmatprep.subr.mxu0 %v333
        %409 = vmatpush1.msra.mxu0 %v332
        %410 = vmatprep.subr.mxu0 %v335
        %411 = vmatpush1.msra.mxu0 %v334
        %412 = vmatprep.mubr.f32.mxu0 %v271
        %413 = vmatmul.mubr.f32.gmra.mrb[0].mxu0 %v270
        %v414 = vpop.f32.mrb[0].mxu0
        %v415 = vadd.f32 %v341, %v414
        %v416 = vpop.f32.mrb[0].mxu0
        %v417 = vadd.f32 %v345, %v416
        %418 = vdwg.mxu0
        %v419 = vmax.f32 %v415, 0.0
        %v420 = vmax.f32 %v417, 0.0
        %v421 = vld [vmem:[#allocation7] sm:$0xff]
        %v422 = vld [vmem:[#allocation7 + $0x8] sm:$0xff]
        %v423 = vld [vmem:[#allocation7 + $0x10] sm:$0xff]
        %v424 = vld [vmem:[#allocation7 + $0x18] sm:$0xff]
        %v425 = vld [vmem:[#allocation7 + $0x20] sm:$0xff]
        %v426 = vld [vmem:[#allocation7 + $0x28] sm:$0xff]
        %v427 = vld [vmem:[#allocation7 + $0x30] sm:$0xff]
        %v428 = vld [vmem:[#allocation7 + $0x38] sm:$0xff]
        %v429 = vld [vmem:[#allocation7 + $0x40] sm:$0xff]
        %v430 = vld [vmem:[#allocation7 + $0x48] sm:$0xff]
        %v431 = vld [vmem:[#allocation7 + $0x50] sm:$0xff]
        %v432 = vld [vmem:[#allocation7 + $0x58] sm:$0xff]
        %v433 = vld [vmem:[#allocation7 + $0x60] sm:$0xff]
        %v434 = vld [vmem:[#allocation7 + $0x68] sm:$0xff]
        %v435 = vld [vmem:[#allocation7 + $0x70] sm:$0xff]
        %v436 = vld [vmem:[#allocation7 + $0x78] sm:$0xff]
        %v437 = vld [vmem:[#allocation7 + $0x80] sm:$0xff]
        %v438 = vld [vmem:[#allocation7 + $0x88] sm:$0xff]
        %v439 = vld [vmem:[#allocation7 + $0x90] sm:$0xff]
        %v440 = vld [vmem:[#allocation7 + $0x98] sm:$0xff]
        %v441 = vld [vmem:[#allocation7 + $0xa0] sm:$0xff]
        %v442 = vld [vmem:[#allocation7 + $0xa8] sm:$0xff]
        %v443 = vld [vmem:[#allocation7 + $0xb0] sm:$0xff]
        %v444 = vld [vmem:[#allocation7 + $0xb8] sm:$0xff]
        %v445 = vld [vmem:[#allocation7 + $0xc0] sm:$0xff]
        %v446 = vld [vmem:[#allocation7 + $0xc8] sm:$0xff]
        %v447 = vld [vmem:[#allocation7 + $0xd0] sm:$0xff]
        %v448 = vld [vmem:[#allocation7 + $0xd8] sm:$0xff]
        %v449 = vld [vmem:[#allocation7 + $0xe0] sm:$0xff]
        %v450 = vld [vmem:[#allocation7 + $0xe8] sm:$0xff]
        %v451 = vld [vmem:[#allocation7 + $0xf0] sm:$0xff]
        %v452 = vld [vmem:[#allocation7 + $0xf8] sm:$0xff]
        %v453 = vld [vmem:[#allocation7 + $0x100] sm:$0xff]
        %v454 = vld [vmem:[#allocation7 + $0x108] sm:$0xff]
        %v455 = vld [vmem:[#allocation7 + $0x110] sm:$0xff]
        %v456 = vld [vmem:[#allocation7 + $0x118] sm:$0xff]
        %v457 = vld [vmem:[#allocation7 + $0x120] sm:$0xff]
        %v458 = vld [vmem:[#allocation7 + $0x128] sm:$0xff]
        %v459 = vld [vmem:[#allocation7 + $0x130] sm:$0xff]
        %v460 = vld [vmem:[#allocation7 + $0x138] sm:$0xff]
        %v461 = vld [vmem:[#allocation7 + $0x140] sm:$0xff]
        %v462 = vld [vmem:[#allocation7 + $0x148] sm:$0xff]
        %v463 = vld [vmem:[#allocation7 + $0x150] sm:$0xff]
        %v464 = vld [vmem:[#allocation7 + $0x158] sm:$0xff]
        %v465 = vld [vmem:[#allocation7 + $0x160] sm:$0xff]
        %v466 = vld [vmem:[#allocation7 + $0x168] sm:$0xff]
        %v467 = vld [vmem:[#allocation7 + $0x170] sm:$0xff]
        %v468 = vld [vmem:[#allocation7 + $0x178] sm:$0xff]
        %v469 = vld [vmem:[#allocation7 + $0x180] sm:$0xff]
        %v470 = vld [vmem:[#allocation7 + $0x188] sm:$0xff]
        %v471 = vld [vmem:[#allocation7 + $0x190] sm:$0xff]
        %v472 = vld [vmem:[#allocation7 + $0x198] sm:$0xff]
        %v473 = vld [vmem:[#allocation7 + $0x1a0] sm:$0xff]
        %v474 = vld [vmem:[#allocation7 + $0x1a8] sm:$0xff]
        %v475 = vld [vmem:[#allocation7 + $0x1b0] sm:$0xff]
        %v476 = vld [vmem:[#allocation7 + $0x1b8] sm:$0xff]
        %v477 = vld [vmem:[#allocation7 + $0x1c0] sm:$0xff]
        %v478 = vld [vmem:[#allocation7 + $0x1c8] sm:$0xff]
        %v479 = vld [vmem:[#allocation7 + $0x1d0] sm:$0xff]
        %v480 = vld [vmem:[#allocation7 + $0x1d8] sm:$0xff]
        %v481 = vld [vmem:[#allocation7 + $0x1e0] sm:$0xff]
        %v482 = vld [vmem:[#allocation7 + $0x1e8] sm:$0xff]
        %v483 = vld [vmem:[#allocation7 + $0x1f0] sm:$0xff]
        %v484 = vld [vmem:[#allocation7 + $0x1f8] sm:$0xff]
        %v485 = vld [vmem:[%s4] sm:$0x3]
        %v487 = vlaneseq
        %v488 = vshrl.u32 %v487, 7
        %v489 = vsub.s32 0, %v488
        %v490 = vrot.slane %v485, %v489
        %v491 = vlaneseq
        %v492 = vshrl.u32 %v491, 7
        %v493 = vsub.s32 1, %v492
        %v494 = vrot.slane %v485, %v493
        %497 = vmatprep.subr.mxu0 %v422
        %498 = vmatpush1.msra.mxu0 %v421
        %499 = vmatprep.subr.mxu0 %v424
        %500 = vmatpush1.msra.mxu0 %v423
        %501 = vmatprep.subr.mxu0 %v426
        %502 = vmatpush1.msra.mxu0 %v425
        %503 = vmatprep.subr.mxu0 %v428
        %504 = vmatpush1.msra.mxu0 %v427
        %505 = vmatprep.subr.mxu0 %v430
        %506 = vmatpush1.msra.mxu0 %v429
        %507 = vmatprep.subr.mxu0 %v432
        %508 = vmatpush1.msra.mxu0 %v431
        %509 = vmatprep.subr.mxu0 %v434
        %510 = vmatpush1.msra.mxu0 %v433
        %511 = vmatprep.subr.mxu0 %v436
        %512 = vmatpush1.msra.mxu0 %v435
        %513 = vmatprep.subr.mxu0 %v438
        %514 = vmatpush1.msra.mxu0 %v437
        %515 = vmatprep.subr.mxu0 %v440
        %516 = vmatpush1.msra.mxu0 %v439
        %517 = vmatprep.subr.mxu0 %v442
        %518 = vmatpush1.msra.mxu0 %v441
        %519 = vmatprep.subr.mxu0 %v444
        %520 = vmatpush1.msra.mxu0 %v443
        %521 = vmatprep.subr.mxu0 %v446
        %522 = vmatpush1.msra.mxu0 %v445
        %523 = vmatprep.subr.mxu0 %v448
        %524 = vmatpush1.msra.mxu0 %v447
        %525 = vmatprep.subr.mxu0 %v450
        %526 = vmatpush1.msra.mxu0 %v449
        %527 = vmatprep.subr.mxu0 %v452
        %528 = vmatpush1.msra.mxu0 %v451
        %529 = vmatprep.subr.mxu0 %v454
        %530 = vmatpush1.msra.mxu0 %v453
        %531 = vmatprep.subr.mxu0 %v456
        %532 = vmatpush1.msra.mxu0 %v455
        %533 = vmatprep.subr.mxu0 %v458
        %534 = vmatpush1.msra.mxu0 %v457
        %535 = vmatprep.subr.mxu0 %v460
        %536 = vmatpush1.msra.mxu0 %v459
        %537 = vmatprep.subr.mxu0 %v462
        %538 = vmatpush1.msra.mxu0 %v461
        %539 = vmatprep.subr.mxu0 %v464
        %540 = vmatpush1.msra.mxu0 %v463
        %541 = vmatprep.subr.mxu0 %v466
        %542 = vmatpush1.msra.mxu0 %v465
        %543 = vmatprep.subr.mxu0 %v468
        %544 = vmatpush1.msra.mxu0 %v467
        %545 = vmatprep.subr.mxu0 %v470
        %546 = vmatpush1.msra.mxu0 %v469
        %547 = vmatprep.subr.mxu0 %v472
        %548 = vmatpush1.msra.mxu0 %v471
        %549 = vmatprep.subr.mxu0 %v474
        %550 = vmatpush1.msra.mxu0 %v473
        %551 = vmatprep.subr.mxu0 %v476
        %552 = vmatpush1.msra.mxu0 %v475
        %553 = vmatprep.subr.mxu0 %v478
        %554 = vmatpush1.msra.mxu0 %v477
        %555 = vmatprep.subr.mxu0 %v480
        %556 = vmatpush1.msra.mxu0 %v479
        %557 = vmatprep.subr.mxu0 %v482
        %558 = vmatpush1.msra.mxu0 %v481
        %559 = vmatprep.subr.mxu0 %v484
        %560 = vmatpush1.msra.mxu0 %v483
        %561 = vmatprep.mubr.f32.mxu0 %v420
        %562 = vmatmul.mubr.f32.gmra.mrb[0].mxu0 %v419
        %v563 = vpop.f32.mrb[0].mxu0
        %v564 = vadd.f32 %v490, %v563
        %v565 = vpop.f32.mrb[0].mxu0
        %v566 = vadd.f32 %v494, %v565
        %567 = vdwg.mxu0
        %568 = vst [vmem:[%s269] sm:$0xff] %v564
        %569 = vst [vmem:[%s269 + $0x8] sm:$0xff] %v566
        %s570 = sand.u32 %s141, 1
        %s571 = scalar_lea.sflag [#allocation4], %s570
        %s572 = sand.u32 %s141, 1
        %s573 = smul.addr %s572, 16
        %s574 = scalar_lea.vmem [#allocation8], %s573
        // Predicated region
        $region53: #{tpu_custom_call.1} parent=39 // pred_check
          %p575 = pneg %p151
        $region54: #{tpu_custom_call.1} parent=39 // pred_check_branch
          %577 = sbr.rel (%p575) target = $region56
        $region55: #{tpu_custom_call.1} parent=39 // pred_region
          %s579 = ssub.s32 256, 256
          %580 = vsyncadd %s571, %s579
          %s581 = smul.addr %s23, 2
          %s582 = smul.addr %s581, 128
          %s583 = scalar_lea.hbm %s5, %s582
          %s585 = sshll.u32 %s574, 4
          %s586 = int_to_ptr.vmem [resolvable:$true] %s585
          %588 = dma.vmem_to_hbm [thread:$0]  %s586, 256, %s583, %s571
        $region56: #{tpu_custom_call.1} parent=39 // pred_fallthru
          _
      $region40: #{tpu_custom_call.1} parent=5 // pred_fallthru
        _
      %p589 = scmp.le.s32.totalorder 2, %s18
      // Predicated region
      $region57: #{tpu_custom_call.1} parent=5 // pred_check
        %p590 = pneg %p589
      $region58: #{tpu_custom_call.1} parent=5 // pred_check_branch
        %592 = sbr.rel (%p590) target = $region60
      $region59: #{tpu_custom_call.1} parent=5 // pred_region
        %s593 = ssub.s32 %s18, 2
        // Predicated region
        $region61: #{tpu_custom_call.1} parent=59 // pred_check
          %p594 = pneg %p157
        $region62: #{tpu_custom_call.1} parent=59 // pred_check_branch
          %596 = sbr.rel (%p594) target = $region64
        $region63: #{tpu_custom_call.1} parent=59 // pred_region
          %s597 = sand.u32 %s142, 1
          %s598 = scalar_lea.sflag [#allocation4], %s597
          %s599 = sand.u32 %s142, 1
          %s600 = smul.addr %s599, 16
          %s601 = scalar_lea.vmem [#allocation8], %s600
          %602 = dma.done %s598, 256
        $region64: #{tpu_custom_call.1} parent=59 // pred_fallthru
          _
      $region60: #{tpu_custom_call.1} parent=5 // pred_fallthru
        _
    $region6: #{tpu_custom_call.1} parent=1 // loop_footer
      %s22 = sadd.s32 1, %s18
    $region7: #{tpu_custom_call.1} parent=1 // loop_footer_branch
      %17 = sbr.rel target = $region3
    $region8: #{tpu_custom_call.1} parent=1 // loop_exit
      _
    %603 = vsyncpa [#allocation3], 1
    %s604 = scalar_lea.sflag [#allocation3], 1
    %605 = vsyncpa %s604, 1
    %606 = vsyncpa [#allocation6], 1
    %607 = vsyncpa [#allocation4], 1
    %s608 = scalar_lea.sflag [#allocation4], 1
    %609 = vsyncpa %s608, 1

</llo_original>
